<compile_context>
chip_gen: v6e
topology: v6e:2x2x1
jax: 0.10.0
libtpu: 0.0.40
codegen_flags: <defaults>
</compile_context>

<pallas_src>
import functools

import jax
import jax.numpy as jnp
from jax.experimental import pallas as pl
from jax.experimental.pallas import tpu as pltpu


def _round_up(x: int, m: int) -> int:
    return ((x + m - 1) // m) * m


def gcn_reduce_kernel(norm_ref, mbox_ref, out_ref, *, D: int, F: int):
    # norm_ref: (TN, 1)    per-node norm
    # mbox_ref: (TN, D*F)  mailbox messages, lane-dense flattened view
    # out_ref:  (TN, F)    accumulated output
    x = mbox_ref[...]
    # Reduce over the message axis D as D-1 VPU adds on (TN, F) slabs
    # (no cross-sublane XLU reduction); accumulate in f32.
    acc = x[:, 0:F].astype(jnp.float32)
    for d in range(1, D):
        acc = acc + x[:, d * F:(d + 1) * F].astype(jnp.float32)
    # Norm is constant over D, so apply it once after the sum (D-fold fewer muls
    # and no (TN, D, F) broadcast intermediate).
    norm = norm_ref[...].astype(jnp.float32)            # (TN, 1) -> broadcast over F
    out_ref[...] = (acc * norm).astype(out_ref.dtype)


def gcn_reduce(self_norm, mailbox_norm, *, target_block_bytes=4 * 1024 * 1024):
    """self_norm: (N, 1); mailbox_norm: (N, D, F) -> accum (N, F)."""
    N, D, F = mailbox_norm.shape
    assert self_norm.shape == (N, 1)
    DF = D * F

    # Tile sizing: largest node tile whose mailbox block is ~target_block_bytes,
    # rounded to a multiple of 8 sublanes.  Prefer >= 2 grid steps when possible
    # so the "parallel" node axis can be sharded over v7x's two TensorCores.
    bytes_per_node = DF * mailbox_norm.dtype.itemsize
    tile_cap = max(8, (target_block_bytes // bytes_per_node) // 8 * 8)
    tile_n = min(tile_cap, max(8, _round_up(pl.cdiv(N, 2), 8)))

    # Ragged node counts: pad up to a multiple of tile_n, slice the result back.
    # TODO(synk): replace wrapper-side zero padding with in-kernel tail masking
    # to avoid the extra copy for very large ragged buckets.
    n_pad = _round_up(N, tile_n)
    mbox2d = mailbox_norm.reshape(N, DF)   # free reshape: row-major contiguous
    norm = self_norm
    if n_pad != N:
        mbox2d = jnp.pad(mbox2d, ((0, n_pad - N), (0, 0)))
        norm = jnp.pad(norm, ((0, n_pad - N), (0, 0)))

    grid = (n_pad // tile_n,)
    kernel = functools.partial(gcn_reduce_kernel, D=D, F=F)
    out = pl.pallas_call(
        kernel,
        out_shape=jax.ShapeDtypeStruct((n_pad, F), mailbox_norm.dtype),
        grid_spec=pltpu.PrefetchScalarGridSpec(
            num_scalar_prefetch=0,
            grid=grid,
            in_specs=[
                pl.BlockSpec((tile_n, 1), lambda i: (i, 0)),
                pl.BlockSpec((tile_n, DF), lambda i: (i, 0)),
            ],
            out_specs=pl.BlockSpec((tile_n, F), lambda i: (i, 0)),
        ),
        compiler_params=pltpu.CompilerParams(
            dimension_semantics=("parallel",),
            # Explicit scoped-VMEM limit: holds the double-buffered ~4 MiB
            # mailbox tiles plus norm/output buffers; safely below physical VMEM
            # on v5e/v6e (128 MiB) and v7x (64 MiB).
            vmem_limit_bytes=48 * 1024 * 1024,
        ),
    )(norm, mbox2d)
    return out[:N] if n_pad != N else out


def gcn_reduce_reference(self_norm, mailbox_norm):
    # Pure-JAX mirror of the PyTorch forward.
    return jnp.sum(mailbox_norm * self_norm[:, None, :], axis=1)


if __name__ == "__main__":
    key = jax.random.PRNGKey(0)
    k1, k2, k3, k4 = jax.random.split(key, 4)

    # nodes, messages per node (bucket degree), feature dim
    N, D, F = 16, 8, 32
    self_norm = jax.random.uniform(k1, (N, 1), dtype=jnp.float32)       # nodes.data['norm']
    mailbox_norm = jax.random.normal(k2, (N, D, F), dtype=jnp.float32)  # nodes.mailbox['norm']

    out = gcn_reduce(self_norm, mailbox_norm)
    out = jax.block_until_ready(out)
    ref = gcn_reduce_reference(self_norm, mailbox_norm)
    assert out.shape == (N, F)
    assert jnp.allclose(out, ref, atol=1e-5, rtol=1e-5)

    # Ragged bucket size (not a multiple of the node tile) exercises the pad path.
    N2 = 13
    self_norm2 = jax.random.uniform(k3, (N2, 1), dtype=jnp.float32)
    mailbox_norm2 = jax.random.normal(k4, (N2, D, F), dtype=jnp.float32)
    out2 = jax.block_until_ready(gcn_reduce(self_norm2, mailbox_norm2))
    ref2 = gcn_reduce_reference(self_norm2, mailbox_norm2)
    assert out2.shape == (N2, F)
    assert jnp.allclose(out2, ref2, atol=1e-5, rtol=1e-5)

    print("KERNEL_OK")
</pallas_src>

<mosaic_0001>
module attributes {stable_mosaic.version = 11 : i64} {
  func.func @gcn_reduce_kernel(%arg0: i32, %arg1: memref<8x1xf32, #tpu.memory_space<vmem>>, %arg2: memref<8x256xf32, #tpu.memory_space<vmem>>, %arg3: memref<8x32xf32, #tpu.memory_space<vmem>>) attributes {dimension_semantics = [#tpu.dimension_semantics<parallel>], iteration_bounds = array<i64: 2>, scalar_prefetch = 0 : i64, scratch_operands = 0 : i64, tpu.core_type = #tpu.core_type<tc>, window_params = [{transform_indices = @transform_0, window_bounds = array<i64: 8, 1>}, {transform_indices = @transform_1, window_bounds = array<i64: 8, 256>}, {transform_indices = @transform_2, window_bounds = array<i64: 8, 32>}]} {
    %c0 = arith.constant 0 : index
    %c0_0 = arith.constant 0 : index
    %0 = vector.load %arg2[%c0, %c0_0] : memref<8x256xf32, #tpu.memory_space<vmem>>, vector<8x256xf32>
    %1 = vector.extract_strided_slice %0 {offsets = [0, 0], sizes = [8, 32], strides = [1, 1]} : vector<8x256xf32> to vector<8x32xf32>
    %2 = vector.extract_strided_slice %0 {offsets = [0, 32], sizes = [8, 32], strides = [1, 1]} : vector<8x256xf32> to vector<8x32xf32>
    %3 = arith.addf %1, %2 : vector<8x32xf32>
    %4 = vector.extract_strided_slice %0 {offsets = [0, 64], sizes = [8, 32], strides = [1, 1]} : vector<8x256xf32> to vector<8x32xf32>
    %5 = arith.addf %3, %4 : vector<8x32xf32>
    %6 = vector.extract_strided_slice %0 {offsets = [0, 96], sizes = [8, 32], strides = [1, 1]} : vector<8x256xf32> to vector<8x32xf32>
    %7 = arith.addf %5, %6 : vector<8x32xf32>
    %8 = vector.extract_strided_slice %0 {offsets = [0, 128], sizes = [8, 32], strides = [1, 1]} : vector<8x256xf32> to vector<8x32xf32>
    %9 = arith.addf %7, %8 : vector<8x32xf32>
    %10 = vector.extract_strided_slice %0 {offsets = [0, 160], sizes = [8, 32], strides = [1, 1]} : vector<8x256xf32> to vector<8x32xf32>
    %11 = arith.addf %9, %10 : vector<8x32xf32>
    %12 = vector.extract_strided_slice %0 {offsets = [0, 192], sizes = [8, 32], strides = [1, 1]} : vector<8x256xf32> to vector<8x32xf32>
    %13 = arith.addf %11, %12 : vector<8x32xf32>
    %14 = vector.extract_strided_slice %0 {offsets = [0, 224], sizes = [8, 32], strides = [1, 1]} : vector<8x256xf32> to vector<8x32xf32>
    %15 = arith.addf %13, %14 : vector<8x32xf32>
    %c0_1 = arith.constant 0 : index
    %c0_2 = arith.constant 0 : index
    %16 = vector.load %arg1[%c0_1, %c0_2] : memref<8x1xf32, #tpu.memory_space<vmem>>, vector<8x1xf32>
    %17 = vector.broadcast %16 : vector<8x1xf32> to vector<8x32xf32>
    %18 = arith.mulf %15, %17 : vector<8x32xf32>
    %c0_3 = arith.constant 0 : index
    %c0_4 = arith.constant 0 : index
    %19 = vector.load %arg3[%c0_3, %c0_4] : memref<8x32xf32, #tpu.memory_space<vmem>>, vector<8x32xf32>
    tpu.vector_store %arg3[%c0_3, %c0_4], %18 {strides = array<i32>} : memref<8x32xf32, #tpu.memory_space<vmem>>, vector<8x32xf32>,
    return
  }
  func.func @transform_0(%arg0: i32) -> (i32, i32) {
    %c0_i32 = arith.constant 0 : i32
    %c0_i32_0 = arith.constant 0 : i32
    return %arg0, %c0_i32 : i32, i32
  }
  func.func @transform_1(%arg0: i32) -> (i32, i32) {
    %c0_i32 = arith.constant 0 : i32
    %c0_i32_0 = arith.constant 0 : i32
    return %arg0, %c0_i32 : i32, i32
  }
  func.func @transform_2(%arg0: i32) -> (i32, i32) {
    %c0_i32 = arith.constant 0 : i32
    %c0_i32_0 = arith.constant 0 : i32
    return %arg0, %c0_i32 : i32, i32
  }
}

</mosaic_0001>

<llo_original>
// kernel: tpu_custom_call.1
$region0: #{tpu_custom_call.1}
  #allocation0 [shape = 'u32[]', space=smem, size = 0x4, offset = 0x4, fixed_abs, tag = 'smem constant byte address 0x4 - core index']
  #allocation1 [shape = 'u32[144,128]{1,0:T(1,128)}', space=vmem, size = 0x12000, scoped, tag = 'internal scratch']
  %s0 = inlined_call_operand.vmem [shape: f32[16,1], index: 0, kind: input, shape index: {}]
  %s1 = inlined_call_operand.hbm [shape: f32[16,256], index: 1, kind: input, shape index: {}]
  %s2 = inlined_call_operand.hbm [shape: f32[16,32], index: 2, kind: output, shape index: {}]
  %s3 = sld [smem:[#allocation0]]
  $region45: #{tpu_custom_call.1} parent=0
    _
  %s5 = ssub.s32 1, %s3
  %s6 = scalar_select 0, %s5, %s3
  $region1: #{tpu_custom_call.1} parent=0
    #allocation2 [shape = 'u8[16384]{0}', space=vmem, size = 0x4000, scoped, tag = 'input window, operand 1']
    #allocation3 [shape = 's32[2]{0}', space=sflag, size = 0x8, scoped, tag = 'scoped memory for tpu_custom_call.1']
    #allocation4 [shape = 's32[2]{0}', space=sflag, size = 0x8, scoped, tag = 'scoped memory for tpu_custom_call.1']
    #allocation5 [shape = 'u8[8192]{0}', space=vmem, size = 0x2000, scoped, tag = 'output window, operand 0']
    %7 = vsyncpa [#allocation3], 0
    %s8 = scalar_lea.sflag [#allocation3], 1
    %9 = vsyncpa %s8, 0
    %10 = vsyncpa [#allocation4], 0
    %s11 = scalar_lea.sflag [#allocation4], 1
    %12 = vsyncpa %s11, 0
    loop: start=0, step=1, limit=4
    $region2: #{tpu_custom_call.1} parent=1 // loop_pre_header
      _
    $region3: #{tpu_custom_call.1} parent=1 // loop_header
      %s14 = sphi 0, %s18
      %p15 = scmp.ge.s32.totalorder %s14, 4
      %s24 = sphi 0, %s26
      %s27 = sphi 0, %s24
      %s28 = sphi 0, %s27
      %s44 = sphi 0, %s28
      %s50 = sphi 0, %s52
      %s53 = sphi 0, %s50
      %s54 = sphi 0, %s53
      %s70 = sphi 0, %s54
      %s76 = sphi 0, %s78
      %s79 = sphi 0, %s76
      %s80 = sphi 0, %s79
      %s96 = sphi 0, %s80
    $region4: #{tpu_custom_call.1} parent=1 // loop_header_branch
      %17 = sbr.rel (%p15) target = $region8
    $region5: #{tpu_custom_call.1} parent=1 // loop_body
      %s19 = ssub.s32 %s14, 1
      %s20 = ssub.s32 %s14, 2
      %s21 = sadd.s32 %s14, 1
      %s22 = ssub.s32 %s14, %s21
      %p23 = scmp.eq.s32.totalorder %s22, 0
      %s25 = sadd.s32 %s24, 1
      %s26 = scalar_select %p23, %s24, %s25
      %p29 = pneg %p23
      %p30 = scmp.eq.s32.totalorder %s14, 1
      %p31 = por %p29, %p30
      %p32 = scmp.ne.s32.totalorder %s24, %s27
      %p33 = scmp.eq.s32.totalorder %s14, 0
      %p34 = por %p32, %p33
      %p35 = scmp.ne.s32.totalorder %s24, %s27
      %p36 = scmp.eq.s32.totalorder %s19, 1
      %p37 = por %p35, %p36
      %p38 = scmp.ne.s32.totalorder %s27, %s28
      %p39 = scmp.eq.s32.totalorder %s19, 0
      %p40 = por %p38, %p39
      %p41 = scmp.ne.s32.totalorder %s27, %s28
      %p42 = scmp.eq.s32.totalorder %s20, 1
      %p43 = por %p41, %p42
      %p45 = scmp.ne.s32.totalorder %s28, %s44
      %p46 = scmp.eq.s32.totalorder %s20, 0
      %p47 = por %p45, %p46
      %s48 = ssub.s32 %s14, %s21
      %p49 = scmp.eq.s32.totalorder %s48, 0
      %s51 = sadd.s32 %s50, 1
      %s52 = scalar_select %p49, %s50, %s51
      %p55 = pneg %p49
      %p56 = scmp.eq.s32.totalorder %s14, 1
      %p57 = por %p55, %p56
      %p58 = scmp.ne.s32.totalorder %s50, %s53
      %p59 = scmp.eq.s32.totalorder %s14, 0
      %p60 = por %p58, %p59
      %p61 = scmp.ne.s32.totalorder %s50, %s53
      %p62 = scmp.eq.s32.totalorder %s19, 1
      %p63 = por %p61, %p62
      %p64 = scmp.ne.s32.totalorder %s53, %s54
      %p65 = scmp.eq.s32.totalorder %s19, 0
      %p66 = por %p64, %p65
      %p67 = scmp.ne.s32.totalorder %s53, %s54
      %p68 = scmp.eq.s32.totalorder %s20, 1
      %p69 = por %p67, %p68
      %p71 = scmp.ne.s32.totalorder %s54, %s70
      %p72 = scmp.eq.s32.totalorder %s20, 0
      %p73 = por %p71, %p72
      %s74 = ssub.s32 %s14, %s21
      %p75 = scmp.eq.s32.totalorder %s74, 0
      %s77 = sadd.s32 %s76, 1
      %s78 = scalar_select %p75, %s76, %s77
      %p81 = pneg %p75
      %p82 = scmp.eq.s32.totalorder %s14, 1
      %p83 = por %p81, %p82
      %p84 = scmp.ne.s32.totalorder %s76, %s79
      %p85 = scmp.eq.s32.totalorder %s14, 0
      %p86 = por %p84, %p85
      %p87 = scmp.ne.s32.totalorder %s76, %s79
      %p88 = scmp.eq.s32.totalorder %s19, 1
      %p89 = por %p87, %p88
      %p90 = scmp.ne.s32.totalorder %s79, %s80
      %p91 = scmp.eq.s32.totalorder %s19, 0
      %p92 = por %p90, %p91
      %p93 = scmp.ne.s32.totalorder %s79, %s80
      %p94 = scmp.eq.s32.totalorder %s20, 1
      %p95 = por %p93, %p94
      %p97 = scmp.ne.s32.totalorder %s80, %s96
      %p98 = scmp.eq.s32.totalorder %s20, 0
      %p99 = por %p97, %p98
      %p100 = scmp.le.s32.totalorder 1, %s14
      %p101 = scmp.lt.s32.totalorder %s14, 3
      %p102 = pnand %p100, %p101
      %p103 = pneg %p102
      // Predicated region
      $region9: #{tpu_custom_call.1} parent=5 // pred_check
        _
      $region10: #{tpu_custom_call.1} parent=5 // pred_check_branch
        %105 = sbr.rel (%p102) target = $region12
      $region11: #{tpu_custom_call.1} parent=5 // pred_region
        %s106 = ssub.s32 %s14, 1
      $region12: #{tpu_custom_call.1} parent=5 // pred_fallthru
        _
      %p107 = scmp.lt.s32.totalorder %s14, 2
      // Predicated region
      $region13: #{tpu_custom_call.1} parent=5 // pred_check
        %p108 = pneg %p107
      $region14: #{tpu_custom_call.1} parent=5 // pred_check_branch
        %110 = sbr.rel (%p108) target = $region16
      $region15: #{tpu_custom_call.1} parent=5 // pred_region
        // Predicated region
        $region17: #{tpu_custom_call.1} parent=15 // pred_check
          %p111 = pneg %p34
        $region18: #{tpu_custom_call.1} parent=15 // pred_check_branch
          %113 = sbr.rel (%p111) target = $region20
        $region19: #{tpu_custom_call.1} parent=15 // pred_region
          %p114 = scmp.lt.s32.totalorder %s14, 1
          %s115 = scalar_select %p114, %s14, 1
          %s116 = smul.addr %s115, 8
          %s117 = scalar_lea.vmem %s0, %s116
        $region20: #{tpu_custom_call.1} parent=15 // pred_fallthru
          _
        // Predicated region
        $region21: #{tpu_custom_call.1} parent=15 // pred_check
          %p118 = pneg %p60
        $region22: #{tpu_custom_call.1} parent=15 // pred_check_branch
          %120 = sbr.rel (%p118) target = $region24
        $region23: #{tpu_custom_call.1} parent=15 // pred_region
          %s121 = sand.u32 %s50, 1
          %s122 = scalar_lea.sflag [#allocation3], %s121
          %s123 = sand.u32 %s50, 1
          %s124 = smul.addr %s123, 16
          %s125 = scalar_lea.vmem [#allocation2], %s124
          %s127 = ssub.s32 256, 256
          %128 = vsyncadd %s122, %s127
          %s129 = smul.addr %s14, 2
          %s130 = smul.addr %s129, 128
          %s131 = scalar_lea.hbm %s1, %s130
          %s133 = sshll.u32 %s125, 4
          %s134 = int_to_ptr.vmem [resolvable:$true] %s133
          %136 = dma.hbm_to_vmem [thread:$0]  %s131, 256, %s134, %s122
        $region24: #{tpu_custom_call.1} parent=15 // pred_fallthru
          _
      $region16: #{tpu_custom_call.1} parent=5 // pred_fallthru
        _
      %p137 = scmp.le.s32.totalorder 1, %s14
      %p138 = scmp.lt.s32.totalorder %s14, 3
      %p139 = pnand %p137, %p138
      %p140 = pneg %p139
      // Predicated region
      $region25: #{tpu_custom_call.1} parent=5 // pred_check
        _
      $region26: #{tpu_custom_call.1} parent=5 // pred_check_branch
        %142 = sbr.rel (%p139) target = $region28
      $region27: #{tpu_custom_call.1} parent=5 // pred_region
        %s143 = ssub.s32 %s14, 1
        %s144 = sand.u32 %s53, 1
        %s145 = scalar_lea.sflag [#allocation3], %s144
        %s146 = sand.u32 %s53, 1
        %s147 = smul.addr %s146, 16
        %s148 = scalar_lea.vmem [#allocation2], %s147
        // Predicated region
        $region29: #{tpu_custom_call.1} parent=27 // pred_check
          %p149 = pneg %p66
        $region30: #{tpu_custom_call.1} parent=27 // pred_check_branch
          %151 = sbr.rel (%p149) target = $region32
        $region31: #{tpu_custom_call.1} parent=27 // pred_region
          %152 = dma.done %s145, 256
        $region32: #{tpu_custom_call.1} parent=27 // pred_fallthru
          _
        %p153 = scmp.lt.s32.totalorder %s19, 1
        %s154 = scalar_select %p153, %s19, 1
        %s155 = smul.addr %s154, 8
        %s156 = scalar_lea.vmem %s0, %s155
        %p157 = pneg %p40
        %p158 = pneg %p37
        %s159 = sand.u32 %s53, 1
        %s160 = scalar_lea.sflag [#allocation3], %s159
        %s161 = sand.u32 %s53, 1
        %s162 = smul.addr %s161, 16
        %s163 = scalar_lea.vmem [#allocation2], %s162
        %p164 = pneg %p66
        %p165 = pneg %p63
        %p166 = pneg %p92
        %p167 = pneg %p89
        %s168 = sand.u32 %s79, 1
        %s169 = scalar_lea.sflag [#allocation4], %s168
        %s170 = sand.u32 %s79, 1
        %s171 = smul.addr %s170, 8
        %s172 = scalar_lea.vmem [#allocation5], %s171
        %p173 = scmp.lt.s32.totalorder %s19, 1
        %s174 = scalar_select %p173, %s19, 1
        %s175 = smul.addr %s174, 8
        %s176 = scalar_lea.vmem %s0, %s175
        %v177 = vld [vmem:[%s148] sm:$0xff]
        %v178 = vld [vmem:[%s148 + $0x8] sm:$0xff]
        %180 = vrot.lane.b32.xlu0 %v177, 96
        %v181 = vpop.permute.xlu0 %180
        %v183 = vadd.f32 %v177, %v181
        %184 = vrot.lane.b32.xlu0 %v177, 64
        %v185 = vpop.permute.xlu0 %184
        %v187 = vadd.f32 %v183, %v185
        %188 = vrot.lane.b32.xlu0 %v177, 32
        %v189 = vpop.permute.xlu0 %188
        %v191 = vadd.f32 %v187, %v189
        %v192 = vadd.f32 %v191, %v178
        %194 = vrot.lane.b32.xlu0 %v178, 96
        %v195 = vpop.permute.xlu0 %194
        %v197 = vadd.f32 %v192, %v195
        %198 = vrot.lane.b32.xlu0 %v178, 64
        %v199 = vpop.permute.xlu0 %198
        %v201 = vadd.f32 %v197, %v199
        %202 = vrot.lane.b32.xlu0 %v178, 32
        %v203 = vpop.permute.xlu0 %202
        %v205 = vadd.f32 %v201, %v203
        %v206 = vld [vmem:[%s176] sm:$0xff]
        %208 = vset.pattern.permute.xlu0 0
        %209 = vperm.xlu0 %208, %v206
        %v210 = vpop.permute.xlu0 %209
        %v212 = vmul.f32 %v205, %v210
        %vm213 = vcmask 261120
        %214 = vst.msk [vmem:[%s172] sm:$0xff] %vm213, %v212
        %s215 = sand.u32 %s79, 1
        %s216 = scalar_lea.sflag [#allocation4], %s215
        %s217 = sand.u32 %s79, 1
        %s218 = smul.addr %s217, 8
        %s219 = scalar_lea.vmem [#allocation5], %s218
        // Predicated region
        $region33: #{tpu_custom_call.1} parent=27 // pred_check
          %p220 = pneg %p89
        $region34: #{tpu_custom_call.1} parent=27 // pred_check_branch
          %222 = sbr.rel (%p220) target = $region36
        $region35: #{tpu_custom_call.1} parent=27 // pred_region
          %s224 = ssub.s32 128, 128
          %225 = vsyncadd %s216, %s224
          %s226 = smul.addr %s19, 128
          %s227 = scalar_lea.hbm %s2, %s226
          %s229 = sshll.u32 %s219, 4
          %s230 = int_to_ptr.vmem [resolvable:$true] %s229
          %232 = dma.vmem_to_hbm [thread:$0]  %s230, 128, %s227, %s216
        $region36: #{tpu_custom_call.1} parent=27 // pred_fallthru
          _
      $region28: #{tpu_custom_call.1} parent=5 // pred_fallthru
        _
      %p233 = scmp.le.s32.totalorder 2, %s14
      // Predicated region
      $region37: #{tpu_custom_call.1} parent=5 // pred_check
        %p234 = pneg %p233
      $region38: #{tpu_custom_call.1} parent=5 // pred_check_branch
        %236 = sbr.rel (%p234) target = $region40
      $region39: #{tpu_custom_call.1} parent=5 // pred_region
        %s237 = ssub.s32 %s14, 2
        // Predicated region
        $region41: #{tpu_custom_call.1} parent=39 // pred_check
          %p238 = pneg %p95
        $region42: #{tpu_custom_call.1} parent=39 // pred_check_branch
          %240 = sbr.rel (%p238) target = $region44
        $region43: #{tpu_custom_call.1} parent=39 // pred_region
          %s241 = sand.u32 %s80, 1
          %s242 = scalar_lea.sflag [#allocation4], %s241
          %s243 = sand.u32 %s80, 1
          %s244 = smul.addr %s243, 8
          %s245 = scalar_lea.vmem [#allocation5], %s244
          %246 = dma.done %s242, 128
        $region44: #{tpu_custom_call.1} parent=39 // pred_fallthru
          _
      $region40: #{tpu_custom_call.1} parent=5 // pred_fallthru
        _
    $region6: #{tpu_custom_call.1} parent=1 // loop_footer
      %s18 = sadd.s32 1, %s14
    $region7: #{tpu_custom_call.1} parent=1 // loop_footer_branch
      %13 = sbr.rel target = $region3
    $region8: #{tpu_custom_call.1} parent=1 // loop_exit
      _
    %247 = vsyncpa [#allocation3], 1
    %s248 = scalar_lea.sflag [#allocation3], 1
    %249 = vsyncpa %s248, 1
    %250 = vsyncpa [#allocation4], 1
    %s251 = scalar_lea.sflag [#allocation4], 1
    %252 = vsyncpa %s251, 1

</llo_original>
